<compile_context>
chip_gen: v7x
topology: tpu7x:2x2x1
jax: 0.10.0
libtpu: 0.0.40
codegen_flags: <defaults>
</compile_context>

<pallas_src>
import functools

import jax
import jax.numpy as jnp
from jax import lax
from jax.experimental import pallas as pl
from jax.experimental.pallas import tpu as pltpu

NEG_INF = -1e9  # masked positions (equivalent to slicing to [:cue_len] before softmax)


# ----------------------------------------------------------------------------
# Helpers
# ----------------------------------------------------------------------------
def _clean_bf16(x):
    """torch.nan_to_num(nan=0, posinf=1, neginf=-1) applied directly to the bf16 tile."""
    x = jnp.where(jnp.isnan(x), 0.0, x)
    x = jnp.where(x == jnp.inf, 1.0, x)
    x = jnp.where(x == -jnp.inf, -1.0, x)
    return x


def _vmem_capacity_bytes():
    """Physical VMEM of the current chip; conservative 64 MiB (v7x per-TC) fallback."""
    try:
        info = pltpu.get_tpu_info()
        return int(getattr(info, "vmem_capacity_bytes", 64 << 20))
    except Exception:
        return 64 << 20


def _chunk_options(L, target=256):
    """Token-chunk sizes (multiples of 8 dividing L, <= target), largest first."""
    opts = [c for c in range(min(L, target), 7, -8) if L % c == 0]
    return opts if opts else [L]


def _vmem_need_bytes(bt, L, H, O, O_pad, ch):
    """Conservative per-grid-step VMEM estimate for a (bt, ch) tiling choice."""
    in_tile = 2 * bt * L * H * 2                # bf16 hidden tile, double buffered
    out_tile = 2 * bt * L * O * 4               # f32 output tile, double buffered
    weights = 2 * (2 * H * H * 2 + H * O_pad * 2 + 2 * H * 4 + O * 4)   # double-buffered (conservative)
    chunk_live = bt * ch * (20 * H + 8 * O_pad)  # ~5 live f32 (ch,H) + 2 f32 (ch,O_pad) per chunk
    misc = bt * (4 * H * 4 + L * 4) + (256 << 10)
    return in_tile + out_tile + weights + chunk_live + misc


def _choose_tiling(B, L, H, O, O_pad, vmem_cap):
    """VMEM-budgeted (bt, chunk): largest batch tile / token chunk that fits ~70% of VMEM,
    preferring >= 2 grid steps so the parallel batch axis can shard across v7x's 2 TCs."""
    budget = int(0.70 * vmem_cap)
    ch_opts = _chunk_options(L)
    divs = sorted((d for d in range(1, B + 1) if B % d == 0), reverse=True)
    pref = [d for d in divs if B // d >= 2] or divs
    for bt in pref:                  # largest bt first (MXU row occupancy, fewer grid steps)
        for ch in ch_opts:           # largest chunk first
            if _vmem_need_bytes(bt, L, H, O, O_pad, ch) <= budget:
                return bt, ch
    return 1, ch_opts[-1]            # best effort if nothing fits the budget


# ----------------------------------------------------------------------------
# Fused SCRO kernel: attention pooling + gated fusion + residual + sigmoid head
# ----------------------------------------------------------------------------
def _scro_kernel(cue_ref, h_ref, watt_ref, wgs_ref, wgh_ref, bg_ref,
                 wlin_ref, blin_ref, out_ref, *, chunk):
    bt, L, H = h_ref.shape
    O = out_ref.shape[-1]
    O_pad = wlin_ref.shape[-1]
    n_chunks = L // chunk
    unroll = n_chunks <= 4

    # Per-row cue lengths from the SMEM scalar-prefetch table (absolute batch offsets).
    b0 = pl.program_id(0) * bt
    bidx = lax.broadcasted_iota(jnp.int32, (bt, 1, 1), 0)
    cue = jnp.zeros((bt, 1, 1), jnp.int32)
    for r in range(bt):                       # bt is small & static: cheap select chain
        cue = jnp.where(bidx == r, cue_ref[b0 + r], cue)

    watt = watt_ref[...].reshape(1, 1, H)     # f32, attention weight row
    bg = bg_ref[...].reshape(1, 1, H)         # f32, gate bias
    blin = blin_ref[...].reshape(1, 1, O)     # f32, classifier bias (unpadded)

    # ---- Phase 1: attention pooling via online softmax over token chunks.
    # Only tiny f32 carries (m, l, acc) stay live across chunks; the chunk itself is the
    # only (ch, H)-sized f32 value.  The Linear(H,1) projection is a VPU broadcast-mul +
    # lane reduce; its scalar bias cancels exactly under softmax (shift invariance).
    def pool_body(c, carry):
        m, l, acc = carry
        start = pl.multiple_of(c * chunk, chunk)
        hc = _clean_bf16(h_ref[:, pl.ds(start, chunk), :])         # bf16 (bt, ch, H)
        hcf = hc.astype(jnp.float32)
        pos = lax.broadcasted_iota(jnp.int32, (bt, chunk, 1), 1) + start
        valid = pos < cue
        sc = jnp.sum(hcf * watt, axis=-1, keepdims=True)           # (bt, ch, 1) f32
        sc = jnp.where(valid, sc, NEG_INF)
        m_new = jnp.maximum(m, jnp.max(sc, axis=1, keepdims=True))
        alpha = jnp.exp(m - m_new)
        p = jnp.exp(sc - m_new)
        l_new = alpha * l + jnp.sum(p, axis=1, keepdims=True)
        acc_new = alpha * acc + jnp.sum(p * hcf, axis=1, keepdims=True)
        return m_new, l_new, acc_new

    m0 = jnp.full((bt, 1, 1), NEG_INF, jnp.float32)
    l0 = jnp.zeros((bt, 1, 1), jnp.float32)
    a0 = jnp.zeros((bt, 1, H), jnp.float32)
    _, l_fin, acc_fin = lax.fori_loop(0, n_chunks, pool_body, (m0, l0, a0), unroll=unroll)
    s_x = acc_fin * pl.reciprocal(l_fin, approx=True)              # (bt, 1, H) f32

    # Gate contribution of s_x (shared across every token of the block): one small matmul.
    g_s = jnp.dot(s_x.reshape(bt, H).astype(jnp.bfloat16), wgs_ref[...],
                  preferred_element_type=jnp.float32).reshape(bt, 1, H)

    # ---- Phase 2: per-chunk gate matmul + fuse + residual + classifier + clamp + store.
    # Re-cleans the bf16 chunk from the input tile (3 cheap selects) instead of keeping a
    # cleaned full-tile scratch; all big intermediates are chunk-sized and die each iter.
    def out_body(c, carry):
        start = pl.multiple_of(c * chunk, chunk)
        hc = _clean_bf16(h_ref[:, pl.ds(start, chunk), :])         # bf16 (bt, ch, H)
        hcf = hc.astype(jnp.float32)
        pos = lax.broadcasted_iota(jnp.int32, (bt, chunk, 1), 1) + start
        valid = pos < cue
        g_h = jnp.dot(hc.reshape(bt * chunk, H), wgh_ref[...],
                      preferred_element_type=jnp.float32).reshape(bt, chunk, H)
        gate = jax.nn.sigmoid(g_s + g_h + bg)
        fused = gate * s_x + (1.0 - gate) * hcf
        new_h = hcf + jnp.where(valid, fused, 0.0)                 # hidden + all_s
        logits = jnp.dot(new_h.reshape(bt * chunk, H).astype(jnp.bfloat16), wlin_ref[...],
                         preferred_element_type=jnp.float32)       # (bt*ch, O_pad) f32
        lo = logits.reshape(bt, chunk, O_pad)[..., :O]             # drop MXU lane padding
        probs = jax.nn.sigmoid(lo + blin)
        out_ref[:, pl.ds(start, chunk), :] = jnp.clip(probs, 1e-7, 1.0 - 1e-7)
        return carry

    lax.fori_loop(0, n_chunks, out_body, 0, unroll=unroll)


# ----------------------------------------------------------------------------
# Wrapper
# ----------------------------------------------------------------------------
def scro_forward(params, hidden_states, batch_subject_ids, input_mask):
    """Pallas implementation of SCRO.forward(hidden_states, batch_subject_ids, input_mask)."""
    # batch_subject_ids only feeds dead code in the reference forward (the pooled `s`
    # vector is never used), so it is accepted for API parity but not consumed.
    del batch_subject_ids
    B, L, H = hidden_states.shape
    O = params["w_lin"].shape[1]
    O_pad = max(128, ((O + 127) // 128) * 128)     # lane-dense classifier matmul RHS

    vmem_cap = _vmem_capacity_bytes()
    bt, chunk = _choose_tiling(B, L, H, O, O_pad, vmem_cap)

    # bf16 at the pallas_call boundary for the big operand (halves DMA bytes, MXU bf16);
    # nan/inf survive the cast so the cleanup inside the kernel is equivalent.
    h_bf = hidden_states.astype(jnp.bfloat16)
    cue_len = jnp.clip(jnp.sum(input_mask.astype(jnp.int32), axis=-1), 1, L).astype(jnp.int32)
    watt = params["w_att"].astype(jnp.float32).reshape(1, H)
    wgs = params["w_gate_s"].astype(jnp.bfloat16)                  # (H, H)
    wgh = params["w_gate_h"].astype(jnp.bfloat16)                  # (H, H)
    bg = params["b_gate"].astype(jnp.float32).reshape(1, H)
    wlin = jnp.pad(params["w_lin"], ((0, 0), (0, O_pad - O))).astype(jnp.bfloat16)
    blin = params["b_lin"].astype(jnp.float32).reshape(1, O)

    def bcast(shape):
        return pl.BlockSpec(shape, lambda g, cue: (0,) * len(shape))

    kernel = functools.partial(_scro_kernel, chunk=chunk)
    out = pl.pallas_call(
        kernel,
        out_shape=jax.ShapeDtypeStruct((B, L, O), jnp.float32),    # true width: no padded slab
        grid_spec=pltpu.PrefetchScalarGridSpec(
            num_scalar_prefetch=1,                                 # cue_len[B] -> SMEM
            grid=(B // bt,),
            in_specs=[
                pl.BlockSpec((bt, L, H), lambda g, cue: (g, 0, 0)),   # hidden_states (bf16)
                bcast((1, H)),                                        # attention weight
                bcast((H, H)),                                        # gate weight (s_x half)
                bcast((H, H)),                                        # gate weight (h half)
                bcast((1, H)),                                        # gate bias
                bcast((H, O_pad)),                                    # classifier weight (padded)
                bcast((1, O)),                                        # classifier bias
            ],
            out_specs=pl.BlockSpec((bt, L, O), lambda g, cue: (g, 0, 0)),
        ),
        compiler_params=pltpu.CompilerParams(
            dimension_semantics=("parallel",),
            vmem_limit_bytes=int(0.9 * vmem_cap),                  # explicit scoped-VMEM budget
        ),
    )(cue_len, h_bf, watt, wgs, wgh, bg, wlin, blin)
    return out


# ----------------------------------------------------------------------------
# Pure-JAX f32 reference (mirrors the PyTorch forward) for correctness checking
# ----------------------------------------------------------------------------
def scro_reference(params, hidden_states, batch_subject_ids, input_mask):
    del batch_subject_ids
    B, L, H = hidden_states.shape
    h = jnp.nan_to_num(hidden_states, nan=0.0, posinf=1.0, neginf=-1.0)
    cue = jnp.clip(jnp.sum(input_mask.astype(jnp.int32), axis=-1), 1, L)
    valid = jnp.arange(L)[None, :] < cue[:, None]                       # (B, L)
    scores = jnp.einsum("blh,h->bl", h, params["w_att"].reshape(-1)) + params["b_att"][0]
    scores = jnp.where(valid, scores, -1e30)
    attn = jax.nn.softmax(scores, axis=-1)
    s_x = jnp.einsum("bl,blh->bh", attn, h)
    gs = s_x @ params["w_gate_s"]
    gh = jnp.einsum("blh,hk->blk", h, params["w_gate_h"])
    gate = jax.nn.sigmoid(gs[:, None, :] + gh + params["b_gate"].reshape(1, 1, H))
    fused = gate * s_x[:, None, :] + (1.0 - gate) * h
    new_h = h + jnp.where(valid[:, :, None], fused, 0.0)
    logits = jnp.einsum("blh,ho->blo", new_h, params["w_lin"]) + params["b_lin"].reshape(1, 1, -1)
    return jnp.clip(jax.nn.sigmoid(logits), 1e-7, 1.0 - 1e-7)


# ----------------------------------------------------------------------------
# Deterministic parameter initialization (nn.Linear-style uniform init)
# ----------------------------------------------------------------------------
def _linear_params(key, din, dout):
    kw, kb = jax.random.split(key)
    bound = 1.0 / (din ** 0.5)
    w = jax.random.uniform(kw, (din, dout), jnp.float32, -bound, bound)
    b = jax.random.uniform(kb, (dout,), jnp.float32, -bound, bound)
    return w, b


def init_params(key, H, num_p):
    ks = jax.random.split(key, 3)
    w_lin, b_lin = _linear_params(ks[0], H, num_p * 2)   # self.linear: H -> num_p*2
    w_att, b_att = _linear_params(ks[1], H, 1)           # self.attention: H -> 1
    w_gate, b_gate = _linear_params(ks[2], 2 * H, H)     # self.gate: 2H -> H
    return dict(
        w_lin=w_lin, b_lin=b_lin,
        w_att=w_att.reshape(1, H),
        b_att=b_att,                 # cancels under softmax (shift invariance) -> unused in kernel
        w_gate_s=w_gate[:H],         # half applied to s_x   (combined = [s_x, h_i])
        w_gate_h=w_gate[H:],         # half applied to h_i
        b_gate=b_gate.reshape(1, H),
    )


if __name__ == "__main__":
    B, L, H, NUM_P = 2, 16, 32, 4
    key = jax.random.PRNGKey(0)
    kp, kh = jax.random.split(key)

    params = init_params(kp, H, NUM_P)
    hidden_states = jax.random.normal(kh, (B, L, H), jnp.float32)
    # prefix-of-ones attention masks with different valid lengths per batch element
    lens = jnp.array([L, L - 5], dtype=jnp.int32)
    input_mask = (jnp.arange(L)[None, :] < lens[:, None]).astype(jnp.int32)
    # only feeds dead code in the reference forward; kept for API parity
    batch_subject_ids = jnp.array([[1, 3], [0, 2]], dtype=jnp.int32)

    output = scro_forward(params, hidden_states, batch_subject_ids, input_mask)
    jax.block_until_ready(output)

    assert output.shape == (B, L, 2 * NUM_P), output.shape
    assert bool(jnp.all(jnp.isfinite(output)))
    assert bool(jnp.all((output >= 1e-7) & (output <= 1.0 - 1e-7)))

    # Tolerance check vs the f32 reference (bf16 inputs + approx reciprocal -> loose atol).
    ref = scro_reference(params, hidden_states, batch_subject_ids, input_mask)
    max_err = float(jnp.max(jnp.abs(output - ref)))
    assert max_err < 2e-2, f"max abs error vs reference: {max_err}"

    print("KERNEL_OK")
</pallas_src>

<mosaic_0001>
module attributes {stable_mosaic.version = 11 : i64} {
  func.func @_scro_kernel(%arg0: i32, %arg1: memref<2xi32, #tpu.memory_space<smem>>, %arg2: memref<1x16x32xbf16, #tpu.memory_space<vmem>>, %arg3: memref<1x32xf32, #tpu.memory_space<vmem>>, %arg4: memref<32x32xbf16, #tpu.memory_space<vmem>>, %arg5: memref<32x32xbf16, #tpu.memory_space<vmem>>, %arg6: memref<1x32xf32, #tpu.memory_space<vmem>>, %arg7: memref<32x128xbf16, #tpu.memory_space<vmem>>, %arg8: memref<1x8xf32, #tpu.memory_space<vmem>>, %arg9: memref<1x16x8xf32, #tpu.memory_space<vmem>>) attributes {dimension_semantics = [#tpu.dimension_semantics<parallel>], iteration_bounds = array<i64: 2>, scalar_prefetch = 1 : i64, scratch_operands = 0 : i64, tpu.core_type = #tpu.core_type<tc>, window_params = [{transform_indices = @transform_0, window_bounds = array<i64: 1, 16, 32>}, {pipeline_mode = #tpu.pipeline_mode<synchronous>, transform_indices = @transform_1, window_bounds = array<i64: 1, 32>}, {pipeline_mode = #tpu.pipeline_mode<synchronous>, transform_indices = @transform_2, window_bounds = array<i64: 32, 32>}, {pipeline_mode = #tpu.pipeline_mode<synchronous>, transform_indices = @transform_3, window_bounds = array<i64: 32, 32>}, {pipeline_mode = #tpu.pipeline_mode<synchronous>, transform_indices = @transform_4, window_bounds = array<i64: 1, 32>}, {pipeline_mode = #tpu.pipeline_mode<synchronous>, transform_indices = @transform_5, window_bounds = array<i64: 32, 128>}, {pipeline_mode = #tpu.pipeline_mode<synchronous>, transform_indices = @transform_6, window_bounds = array<i64: 1, 8>}, {transform_indices = @transform_7, window_bounds = array<i64: 1, 16, 8>}]} {
    %c1_i32 = arith.constant 1 : i32
    %0 = arith.muli %arg0, %c1_i32 : i32
    %1 = tpu.iota {dimensions = array<i32: 0>} : vector<1x1x1xi32>
    %c0_i32 = arith.constant 0 : i32
    %2 = vector.broadcast %c0_i32 : i32 to vector<1x1x1xi32>
    %c0_i32_0 = arith.constant 0 : i32
    %3 = vector.broadcast %c0_i32_0 : i32 to vector<1x1x1xi32>
    %4 = arith.cmpi eq, %1, %3 : vector<1x1x1xi32>
    %c0_i32_1 = arith.constant 0 : i32
    %5 = arith.addi %0, %c0_i32_1 : i32
    %6 = arith.index_cast %5 : i32 to index
    %7 = memref.load %arg1[%6] : memref<2xi32, #tpu.memory_space<smem>>
    %8 = vector.broadcast %7 : i32 to vector<1x1x1xi32>
    %9 = arith.select %4, %8, %2 : vector<1x1x1xi1>, vector<1x1x1xi32>
    %c0 = arith.constant 0 : index
    %c0_2 = arith.constant 0 : index
    %10 = vector.load %arg3[%c0, %c0_2] : memref<1x32xf32, #tpu.memory_space<vmem>>, vector<1x32xf32>
    %11 = vector.shape_cast %10 : vector<1x32xf32> to vector<1x1x32xf32>
    %c0_3 = arith.constant 0 : index
    %c0_4 = arith.constant 0 : index
    %12 = vector.load %arg6[%c0_3, %c0_4] : memref<1x32xf32, #tpu.memory_space<vmem>>, vector<1x32xf32>
    %13 = vector.shape_cast %12 : vector<1x32xf32> to vector<1x1x32xf32>
    %c0_5 = arith.constant 0 : index
    %c0_6 = arith.constant 0 : index
    %14 = vector.load %arg8[%c0_5, %c0_6] : memref<1x8xf32, #tpu.memory_space<vmem>>, vector<1x8xf32>
    %15 = vector.shape_cast %14 : vector<1x8xf32> to vector<1x1x8xf32>
    %cst = arith.constant -1.000000e+09 : f32
    %16 = vector.broadcast %cst : f32 to vector<1x1x1xf32>
    %cst_7 = arith.constant 0.000000e+00 : f32
    %17 = vector.broadcast %cst_7 : f32 to vector<1x1x1xf32>
    %cst_8 = arith.constant 0.000000e+00 : f32
    %18 = vector.broadcast %cst_8 : f32 to vector<1x1x32xf32>
    %c0_i32_9 = arith.constant 0 : i32
    %c16_i32 = arith.constant 16 : i32
    %19 = arith.muli %c0_i32_9, %c16_i32 : i32
    %20 = tpu.assume_multiple %19, 16 : i32
    %c0_10 = arith.constant 0 : index
    %21 = arith.index_cast %20 : i32 to index
    %c0_11 = arith.constant 0 : index
    %22 = vector.load %arg2[%c0_10, %21, %c0_11] : memref<1x16x32xbf16, #tpu.memory_space<vmem>>, vector<1x16x32xbf16>
    %23 = arith.cmpf one, %22, %22 : vector<1x16x32xbf16>
    %cst_12 = arith.constant 0.000000e+00 : f32
    %24 = arith.truncf %cst_12 : f32 to bf16
    %25 = vector.broadcast %24 : bf16 to vector<1x16x32xbf16>
    %26 = arith.select %23, %25, %22 : vector<1x16x32xi1>, vector<1x16x32xbf16>
    %cst_13 = arith.constant 0x7F80 : bf16
    %27 = vector.broadcast %cst_13 : bf16 to vector<1x16x32xbf16>
    %28 = arith.cmpf oeq, %26, %27 : vector<1x16x32xbf16>
    %cst_14 = arith.constant 1.000000e+00 : f32
    %29 = arith.truncf %cst_14 : f32 to bf16
    %30 = vector.broadcast %29 : bf16 to vector<1x16x32xbf16>
    %31 = arith.select %28, %30, %26 : vector<1x16x32xi1>, vector<1x16x32xbf16>
    %cst_15 = arith.constant 0xFF80 : bf16
    %32 = vector.broadcast %cst_15 : bf16 to vector<1x16x32xbf16>
    %33 = arith.cmpf oeq, %31, %32 : vector<1x16x32xbf16>
    %cst_16 = arith.constant -1.000000e+00 : f32
    %34 = arith.truncf %cst_16 : f32 to bf16
    %35 = vector.broadcast %34 : bf16 to vector<1x16x32xbf16>
    %36 = arith.select %33, %35, %31 : vector<1x16x32xi1>, vector<1x16x32xbf16>
    %37 = arith.extf %36 : vector<1x16x32xbf16> to vector<1x16x32xf32>
    %38 = tpu.iota {dimensions = array<i32: 1>} : vector<1x16x1xi32>
    %39 = vector.broadcast %20 : i32 to vector<1x16x1xi32>
    %40 = arith.addi %38, %39 : vector<1x16x1xi32>
    %41 = vector.broadcast %9 : vector<1x1x1xi32> to vector<1x16x1xi32>
    %42 = arith.cmpi slt, %40, %41 : vector<1x16x1xi32>
    %43 = vector.broadcast %11 : vector<1x1x32xf32> to vector<1x16x32xf32>
    %44 = arith.mulf %37, %43 : vector<1x16x32xf32>
    %cst_17 = arith.constant dense<0.000000e+00> : vector<1x16xf32>
    %45 = vector.multi_reduction <add>, %44, %cst_17 [2] : vector<1x16x32xf32> to vector<1x16xf32>
    %46 = vector.shape_cast %45 : vector<1x16xf32> to vector<1x16x1xf32>
    %cst_18 = arith.constant -1.000000e+09 : f32
    %47 = vector.broadcast %cst_18 : f32 to vector<1x16x1xf32>
    %48 = arith.select %42, %46, %47 : vector<1x16x1xi1>, vector<1x16x1xf32>
    %cst_19 = arith.constant dense<0xFF800000> : vector<1x1xf32>
    %49 = vector.multi_reduction <maximumf>, %48, %cst_19 [1] : vector<1x16x1xf32> to vector<1x1xf32>
    %50 = vector.shape_cast %49 : vector<1x1xf32> to vector<1x1x1xf32>
    %51 = arith.maximumf %16, %50 : vector<1x1x1xf32>
    %52 = arith.subf %16, %51 : vector<1x1x1xf32>
    %53 = math.exp %52 : vector<1x1x1xf32>
    %54 = vector.broadcast %51 : vector<1x1x1xf32> to vector<1x16x1xf32>
    %55 = arith.subf %48, %54 : vector<1x16x1xf32>
    %56 = math.exp %55 : vector<1x16x1xf32>
    %57 = arith.mulf %53, %17 : vector<1x1x1xf32>
    %cst_20 = arith.constant dense<0.000000e+00> : vector<1x1xf32>
    %58 = vector.multi_reduction <add>, %56, %cst_20 [1] : vector<1x16x1xf32> to vector<1x1xf32>
    %59 = vector.shape_cast %58 : vector<1x1xf32> to vector<1x1x1xf32>
    %60 = arith.addf %57, %59 : vector<1x1x1xf32>
    %61 = vector.broadcast %53 : vector<1x1x1xf32> to vector<1x1x32xf32>
    %62 = arith.mulf %61, %18 : vector<1x1x32xf32>
    %63 = vector.broadcast %56 : vector<1x16x1xf32> to vector<1x16x32xf32>
    %64 = arith.mulf %63, %37 : vector<1x16x32xf32>
    %cst_21 = arith.constant dense<0.000000e+00> : vector<1x32xf32>
    %65 = vector.multi_reduction <add>, %64, %cst_21 [1] : vector<1x16x32xf32> to vector<1x32xf32>
    %66 = vector.shape_cast %65 : vector<1x32xf32> to vector<1x1x32xf32>
    %67 = arith.addf %62, %66 : vector<1x1x32xf32>
    %c1_i32_22 = arith.constant 1 : i32
    %68 = tpu.reciprocal %60 {approx = true} : vector<1x1x1xf32> -> vector<1x1x1xf32>
    %69 = vector.broadcast %68 : vector<1x1x1xf32> to vector<1x1x32xf32>
    %70 = arith.mulf %67, %69 : vector<1x1x32xf32>
    %71 = vector.shape_cast %70 : vector<1x1x32xf32> to vector<1x32xf32>
    %72 = arith.truncf %71 : vector<1x32xf32> to vector<1x32xbf16>
    %c0_23 = arith.constant 0 : index
    %c0_24 = arith.constant 0 : index
    %73 = vector.load %arg4[%c0_23, %c0_24] : memref<32x32xbf16, #tpu.memory_space<vmem>>, vector<32x32xbf16>
    %cst_25 = arith.constant dense<0.000000e+00> : vector<1x32xf32>
    %74 = tpu.matmul %72, %73, %cst_25 {dimension_numbers = #tpu.dot_dimension_numbers<[1], [0], [0], [1], [0, 0, 1, 1], [], []>} : vector<1x32xbf16>, vector<32x32xbf16>, vector<1x32xf32> -> vector<1x32xf32>
    %75 = vector.shape_cast %74 : vector<1x32xf32> to vector<1x1x32xf32>
    %c0_i32_26 = arith.constant 0 : i32
    %c16_i32_27 = arith.constant 16 : i32
    %76 = arith.muli %c0_i32_26, %c16_i32_27 : i32
    %77 = tpu.assume_multiple %76, 16 : i32
    %c0_28 = arith.constant 0 : index
    %78 = arith.index_cast %77 : i32 to index
    %c0_29 = arith.constant 0 : index
    %79 = vector.load %arg2[%c0_28, %78, %c0_29] : memref<1x16x32xbf16, #tpu.memory_space<vmem>>, vector<1x16x32xbf16>
    %80 = arith.cmpf one, %79, %79 : vector<1x16x32xbf16>
    %cst_30 = arith.constant 0.000000e+00 : f32
    %81 = arith.truncf %cst_30 : f32 to bf16
    %82 = vector.broadcast %81 : bf16 to vector<1x16x32xbf16>
    %83 = arith.select %80, %82, %79 : vector<1x16x32xi1>, vector<1x16x32xbf16>
    %cst_31 = arith.constant 0x7F80 : bf16
    %84 = vector.broadcast %cst_31 : bf16 to vector<1x16x32xbf16>
    %85 = arith.cmpf oeq, %83, %84 : vector<1x16x32xbf16>
    %cst_32 = arith.constant 1.000000e+00 : f32
    %86 = arith.truncf %cst_32 : f32 to bf16
    %87 = vector.broadcast %86 : bf16 to vector<1x16x32xbf16>
    %88 = arith.select %85, %87, %83 : vector<1x16x32xi1>, vector<1x16x32xbf16>
    %cst_33 = arith.constant 0xFF80 : bf16
    %89 = vector.broadcast %cst_33 : bf16 to vector<1x16x32xbf16>
    %90 = arith.cmpf oeq, %88, %89 : vector<1x16x32xbf16>
    %cst_34 = arith.constant -1.000000e+00 : f32
    %91 = arith.truncf %cst_34 : f32 to bf16
    %92 = vector.broadcast %91 : bf16 to vector<1x16x32xbf16>
    %93 = arith.select %90, %92, %88 : vector<1x16x32xi1>, vector<1x16x32xbf16>
    %94 = arith.extf %93 : vector<1x16x32xbf16> to vector<1x16x32xf32>
    %95 = tpu.iota {dimensions = array<i32: 1>} : vector<1x16x1xi32>
    %96 = vector.broadcast %77 : i32 to vector<1x16x1xi32>
    %97 = arith.addi %95, %96 : vector<1x16x1xi32>
    %98 = vector.broadcast %9 : vector<1x1x1xi32> to vector<1x16x1xi32>
    %99 = arith.cmpi slt, %97, %98 : vector<1x16x1xi32>
    %100 = vector.shape_cast %93 : vector<1x16x32xbf16> to vector<16x32xbf16>
    %c0_35 = arith.constant 0 : index
    %c0_36 = arith.constant 0 : index
    %101 = vector.load %arg5[%c0_35, %c0_36] : memref<32x32xbf16, #tpu.memory_space<vmem>>, vector<32x32xbf16>
    %cst_37 = arith.constant dense<0.000000e+00> : vector<16x32xf32>
    %102 = tpu.matmul %100, %101, %cst_37 {dimension_numbers = #tpu.dot_dimension_numbers<[1], [0], [0], [1], [0, 0, 1, 1], [], []>} : vector<16x32xbf16>, vector<32x32xbf16>, vector<16x32xf32> -> vector<16x32xf32>
    %103 = vector.shape_cast %102 : vector<16x32xf32> to vector<1x16x32xf32>
    %104 = vector.broadcast %75 : vector<1x1x32xf32> to vector<1x16x32xf32>
    %105 = arith.addf %104, %103 : vector<1x16x32xf32>
    %106 = vector.broadcast %13 : vector<1x1x32xf32> to vector<1x16x32xf32>
    %107 = arith.addf %105, %106 : vector<1x16x32xf32>
    %108 = arith.negf %107 : vector<1x16x32xf32>
    %109 = math.exp %108 : vector<1x16x32xf32>
    %cst_38 = arith.constant 1.000000e+00 : f32
    %110 = vector.broadcast %cst_38 : f32 to vector<1x16x32xf32>
    %111 = arith.addf %110, %109 : vector<1x16x32xf32>
    %112 = arith.divf %110, %111 : vector<1x16x32xf32>
    %113 = vector.broadcast %70 : vector<1x1x32xf32> to vector<1x16x32xf32>
    %114 = arith.mulf %112, %113 : vector<1x16x32xf32>
    %cst_39 = arith.constant 1.000000e+00 : f32
    %115 = vector.broadcast %cst_39 : f32 to vector<1x16x32xf32>
    %116 = arith.subf %115, %112 : vector<1x16x32xf32>
    %117 = arith.mulf %116, %94 : vector<1x16x32xf32>
    %118 = arith.addf %114, %117 : vector<1x16x32xf32>
    %cst_40 = arith.constant 0.000000e+00 : f32
    %119 = vector.shape_cast %99 : vector<1x16x1xi1> to vector<1x16x1xi1>
    %120 = vector.broadcast %119 : vector<1x16x1xi1> to vector<1x16x32xi1>
    %121 = vector.broadcast %cst_40 : f32 to vector<1x16x32xf32>
    %122 = arith.select %120, %118, %121 : vector<1x16x32xi1>, vector<1x16x32xf32>
    %123 = arith.addf %94, %122 : vector<1x16x32xf32>
    %124 = vector.shape_cast %123 : vector<1x16x32xf32> to vector<16x32xf32>
    %125 = arith.truncf %124 : vector<16x32xf32> to vector<16x32xbf16>
    %c0_41 = arith.constant 0 : index
    %c0_42 = arith.constant 0 : index
    %126 = vector.load %arg7[%c0_41, %c0_42] : memref<32x128xbf16, #tpu.memory_space<vmem>>, vector<32x128xbf16>
    %cst_43 = arith.constant dense<0.000000e+00> : vector<16x128xf32>
    %127 = tpu.matmul %125, %126, %cst_43 {dimension_numbers = #tpu.dot_dimension_numbers<[1], [0], [0], [1], [0, 0, 1, 1], [], []>} : vector<16x32xbf16>, vector<32x128xbf16>, vector<16x128xf32> -> vector<16x128xf32>
    %128 = vector.shape_cast %127 : vector<16x128xf32> to vector<1x16x128xf32>
    %129 = vector.extract_strided_slice %128 {offsets = [0, 0, 0], sizes = [1, 16, 8], strides = [1, 1, 1]} : vector<1x16x128xf32> to vector<1x16x8xf32>
    %130 = vector.broadcast %15 : vector<1x1x8xf32> to vector<1x16x8xf32>
    %131 = arith.addf %129, %130 : vector<1x16x8xf32>
    %132 = arith.negf %131 : vector<1x16x8xf32>
    %133 = math.exp %132 : vector<1x16x8xf32>
    %cst_44 = arith.constant 1.000000e+00 : f32
    %134 = vector.broadcast %cst_44 : f32 to vector<1x16x8xf32>
    %135 = arith.addf %134, %133 : vector<1x16x8xf32>
    %136 = arith.divf %134, %135 : vector<1x16x8xf32>
    %cst_45 = arith.constant 1.000000e-07 : f32
    %cst_46 = arith.constant 0.99999988 : f32
    %137 = vector.broadcast %cst_45 : f32 to vector<1x16x8xf32>
    %138 = arith.maximumf %137, %136 : vector<1x16x8xf32>
    %139 = vector.broadcast %cst_46 : f32 to vector<1x16x8xf32>
    %140 = arith.minimumf %139, %138 : vector<1x16x8xf32>
    %c0_47 = arith.constant 0 : index
    %141 = arith.index_cast %77 : i32 to index
    %c0_48 = arith.constant 0 : index
    %142 = vector.load %arg9[%c0_47, %141, %c0_48] : memref<1x16x8xf32, #tpu.memory_space<vmem>>, vector<1x16x8xf32>
    tpu.vector_store %arg9[%c0_47, %141, %c0_48], %140 {strides = array<i32>} : memref<1x16x8xf32, #tpu.memory_space<vmem>>, vector<1x16x8xf32>,
    %c1_i32_49 = arith.constant 1 : i32
    return
  }
  func.func @transform_0(%arg0: i32, %arg1: memref<2xi32, #tpu.memory_space<smem>>) -> (i32, i32, i32) {
    %c0_i32 = arith.constant 0 : i32
    %c0_i32_0 = arith.constant 0 : i32
    %c0_i32_1 = arith.constant 0 : i32
    return %arg0, %c0_i32, %c0_i32_0 : i32, i32, i32
  }
  func.func @transform_1(%arg0: i32, %arg1: memref<2xi32, #tpu.memory_space<smem>>) -> (i32, i32) {
    %c0_i32 = arith.constant 0 : i32
    %c0_i32_0 = arith.constant 0 : i32
    %c0_i32_1 = arith.constant 0 : i32
    return %c0_i32, %c0_i32_0 : i32, i32
  }
  func.func @transform_2(%arg0: i32, %arg1: memref<2xi32, #tpu.memory_space<smem>>) -> (i32, i32) {
    %c0_i32 = arith.constant 0 : i32
    %c0_i32_0 = arith.constant 0 : i32
    %c0_i32_1 = arith.constant 0 : i32
    return %c0_i32, %c0_i32_0 : i32, i32
  }
  func.func @transform_3(%arg0: i32, %arg1: memref<2xi32, #tpu.memory_space<smem>>) -> (i32, i32) {
    %c0_i32 = arith.constant 0 : i32
    %c0_i32_0 = arith.constant 0 : i32
    %c0_i32_1 = arith.constant 0 : i32
    return %c0_i32, %c0_i32_0 : i32, i32
  }
  func.func @transform_4(%arg0: i32, %arg1: memref<2xi32, #tpu.memory_space<smem>>) -> (i32, i32) {
    %c0_i32 = arith.constant 0 : i32
    %c0_i32_0 = arith.constant 0 : i32
    %c0_i32_1 = arith.constant 0 : i32
    return %c0_i32, %c0_i32_0 : i32, i32
  }
  func.func @transform_5(%arg0: i32, %arg1: memref<2xi32, #tpu.memory_space<smem>>) -> (i32, i32) {
    %c0_i32 = arith.constant 0 : i32
    %c0_i32_0 = arith.constant 0 : i32
    %c0_i32_1 = arith.constant 0 : i32
    return %c0_i32, %c0_i32_0 : i32, i32
  }
  func.func @transform_6(%arg0: i32, %arg1: memref<2xi32, #tpu.memory_space<smem>>) -> (i32, i32) {
    %c0_i32 = arith.constant 0 : i32
    %c0_i32_0 = arith.constant 0 : i32
    %c0_i32_1 = arith.constant 0 : i32
    return %c0_i32, %c0_i32_0 : i32, i32
  }
  func.func @transform_7(%arg0: i32, %arg1: memref<2xi32, #tpu.memory_space<smem>>) -> (i32, i32, i32) {
    %c0_i32 = arith.constant 0 : i32
    %c0_i32_0 = arith.constant 0 : i32
    %c0_i32_1 = arith.constant 0 : i32
    return %arg0, %c0_i32, %c0_i32_0 : i32, i32, i32
  }
}

</mosaic_0001>

<llo_original>
// kernel: tpu_custom_call.1
$region0: #{tpu_custom_call.1}
  #allocation0 [shape = 'u32[]', space=smem, size = 0x4, offset = 0x4, fixed_abs, tag = 'smem constant byte address 0x4 - core index']
  #allocation1 [shape = 'u32[144,128]{1,0:T(1,128)}', space=vmem, size = 0x12000, scoped, tag = 'internal scratch']
  #allocation2 [shape = 's32[1]{0}', space=sflag, size = 0x4, scoped, tag = 'scoped memory for tpu_custom_call.1']
  #allocation3 [shape = 'u8[512]{0}', space=smem, size = 0x200, scoped, tag = 'prefetched SMEM operand 0']
  %s0 = inlined_call_operand.hbm [shape: s32[2], index: 0, kind: input, shape index: {}]
  %s1 = inlined_call_operand.hbm [shape: bf16[2,16,32], index: 1, kind: input, shape index: {}]
  %s2 = inlined_call_operand.vmem [shape: f32[1,32], index: 2, kind: input, shape index: {}]
  %s3 = inlined_call_operand.hbm [shape: bf16[32,32], index: 3, kind: input, shape index: {}]
  %s4 = inlined_call_operand.hbm [shape: bf16[32,32], index: 4, kind: input, shape index: {}]
  %s5 = inlined_call_operand.vmem [shape: f32[1,32], index: 5, kind: input, shape index: {}]
  %s6 = inlined_call_operand.vmem [shape: bf16[32,128], index: 6, kind: input, shape index: {}]
  %s7 = inlined_call_operand.vmem [shape: f32[1,8], index: 7, kind: input, shape index: {}]
  %s8 = inlined_call_operand.vmem [shape: f32[2,16,8], index: 8, kind: output, shape index: {}]
  %s9 = sld [smem:[#allocation0]]
  $region73: #{tpu_custom_call.1} parent=0
    _
  %s11 = ssub.s32 1, %s9
  %s12 = scalar_select 0, %s11, %s9
  %14 = dma.hbm_to_smem %s0, 16, [#allocation3], [#allocation2]
  %15 = dma.done [#allocation2], 16
  %16 = sfence
  $region1: #{tpu_custom_call.1} parent=0
    #allocation4 [shape = 'u8[8192]{0}', space=vmem, size = 0x2000, scoped, tag = 'input window, operand 1']
    #allocation5 [shape = 's32[2]{0}', space=sflag, size = 0x8, scoped, tag = 'scoped memory for tpu_custom_call.1']
    #allocation6 [shape = 'u8[8192]{0}', space=vmem, size = 0x2000, scoped, tag = 'input window, operand 3, single buffered']
    #allocation7 [shape = 's32[1]{0}', space=sflag, size = 0x4, scoped, tag = 'scoped memory for tpu_custom_call.1']
    #allocation8 [shape = 'u8[8192]{0}', space=vmem, size = 0x2000, scoped, tag = 'input window, operand 4, single buffered']
    %17 = vsyncpa [#allocation5], 0
    %s18 = scalar_lea.sflag [#allocation5], 1
    %19 = vsyncpa %s18, 0
    %20 = vsyncpa [#allocation7], 0
    loop: start=0, step=1, limit=4
    $region2: #{tpu_custom_call.1} parent=1 // loop_pre_header
      _
    $region3: #{tpu_custom_call.1} parent=1 // loop_header
      %s22 = sphi 0, %s26
      %p23 = scmp.ge.s32.totalorder %s22, 4
      %s32 = sphi 0, %s34
      %s35 = sphi 0, %s32
      %s36 = sphi 0, %s35
      %s52 = sphi 0, %s36
      %s56 = sphi 0, %s56
      %s58 = sphi 0, %s56
      %s59 = sphi 0, %s58
      %s73 = sphi 0, %s59
      %s77 = sphi 0, %s77
      %s79 = sphi 0, %s77
      %s80 = sphi 0, %s79
      %s94 = sphi 0, %s80
      %s98 = sphi 0, %s98
      %s100 = sphi 0, %s98
      %s101 = sphi 0, %s100
      %s115 = sphi 0, %s101
      %s119 = sphi 0, %s119
      %s121 = sphi 0, %s119
      %s122 = sphi 0, %s121
      %s136 = sphi 0, %s122
      %s140 = sphi 0, %s140
      %s142 = sphi 0, %s140
      %s143 = sphi 0, %s142
      %s157 = sphi 0, %s143
      %s161 = sphi 0, %s161
      %s163 = sphi 0, %s161
      %s164 = sphi 0, %s163
      %s178 = sphi 0, %s164
      %s184 = sphi 0, %s186
      %s187 = sphi 0, %s184
      %s188 = sphi 0, %s187
      %s204 = sphi 0, %s188
    $region4: #{tpu_custom_call.1} parent=1 // loop_header_branch
      %25 = sbr.rel (%p23) target = $region8
    $region5: #{tpu_custom_call.1} parent=1 // loop_body
      %s27 = ssub.s32 %s22, 1
      %s28 = ssub.s32 %s22, 2
      %s29 = sadd.s32 %s22, 1
      %s30 = ssub.s32 %s22, %s29
      %p31 = scmp.eq.s32.totalorder %s30, 0
      %s33 = sadd.s32 %s32, 1
      %s34 = scalar_select %p31, %s32, %s33
      %p37 = pneg %p31
      %p38 = scmp.eq.s32.totalorder %s22, 1
      %p39 = por %p37, %p38
      %p40 = scmp.ne.s32.totalorder %s32, %s35
      %p41 = scmp.eq.s32.totalorder %s22, 0
      %p42 = por %p40, %p41
      %p43 = scmp.ne.s32.totalorder %s32, %s35
      %p44 = scmp.eq.s32.totalorder %s27, 1
      %p45 = por %p43, %p44
      %p46 = scmp.ne.s32.totalorder %s35, %s36
      %p47 = scmp.eq.s32.totalorder %s27, 0
      %p48 = por %p46, %p47
      %p49 = scmp.ne.s32.totalorder %s35, %s36
      %p50 = scmp.eq.s32.totalorder %s28, 1
      %p51 = por %p49, %p50
      %p53 = scmp.ne.s32.totalorder %s36, %s52
      %p54 = scmp.eq.s32.totalorder %s28, 0
      %p55 = por %p53, %p54
      %s57 = sadd.s32 %s56, 1
      %p60 = scmp.eq.s32.totalorder %s22, 1
      %p61 = scmp.ne.s32.totalorder %s56, %s58
      %p62 = scmp.eq.s32.totalorder %s22, 0
      %p63 = por %p61, %p62
      %p64 = scmp.ne.s32.totalorder %s56, %s58
      %p65 = scmp.eq.s32.totalorder %s27, 1
      %p66 = por %p64, %p65
      %p67 = scmp.ne.s32.totalorder %s58, %s59
      %p68 = scmp.eq.s32.totalorder %s27, 0
      %p69 = por %p67, %p68
      %p70 = scmp.ne.s32.totalorder %s58, %s59
      %p71 = scmp.eq.s32.totalorder %s28, 1
      %p72 = por %p70, %p71
      %p74 = scmp.ne.s32.totalorder %s59, %s73
      %p75 = scmp.eq.s32.totalorder %s28, 0
      %p76 = por %p74, %p75
      %s78 = sadd.s32 %s77, 1
      %p81 = scmp.eq.s32.totalorder %s22, 1
      %p82 = scmp.ne.s32.totalorder %s77, %s79
      %p83 = scmp.eq.s32.totalorder %s22, 0
      %p84 = por %p82, %p83
      %p85 = scmp.ne.s32.totalorder %s77, %s79
      %p86 = scmp.eq.s32.totalorder %s27, 1
      %p87 = por %p85, %p86
      %p88 = scmp.ne.s32.totalorder %s79, %s80
      %p89 = scmp.eq.s32.totalorder %s27, 0
      %p90 = por %p88, %p89
      %p91 = scmp.ne.s32.totalorder %s79, %s80
      %p92 = scmp.eq.s32.totalorder %s28, 1
      %p93 = por %p91, %p92
      %p95 = scmp.ne.s32.totalorder %s80, %s94
      %p96 = scmp.eq.s32.totalorder %s28, 0
      %p97 = por %p95, %p96
      %s99 = sadd.s32 %s98, 1
      %p102 = scmp.eq.s32.totalorder %s22, 1
      %p103 = scmp.ne.s32.totalorder %s98, %s100
      %p104 = scmp.eq.s32.totalorder %s22, 0
      %p105 = por %p103, %p104
      %p106 = scmp.ne.s32.totalorder %s98, %s100
      %p107 = scmp.eq.s32.totalorder %s27, 1
      %p108 = por %p106, %p107
      %p109 = scmp.ne.s32.totalorder %s100, %s101
      %p110 = scmp.eq.s32.totalorder %s27, 0
      %p111 = por %p109, %p110
      %p112 = scmp.ne.s32.totalorder %s100, %s101
      %p113 = scmp.eq.s32.totalorder %s28, 1
      %p114 = por %p112, %p113
      %p116 = scmp.ne.s32.totalorder %s101, %s115
      %p117 = scmp.eq.s32.totalorder %s28, 0
      %p118 = por %p116, %p117
      %s120 = sadd.s32 %s119, 1
      %p123 = scmp.eq.s32.totalorder %s22, 1
      %p124 = scmp.ne.s32.totalorder %s119, %s121
      %p125 = scmp.eq.s32.totalorder %s22, 0
      %p126 = por %p124, %p125
      %p127 = scmp.ne.s32.totalorder %s119, %s121
      %p128 = scmp.eq.s32.totalorder %s27, 1
      %p129 = por %p127, %p128
      %p130 = scmp.ne.s32.totalorder %s121, %s122
      %p131 = scmp.eq.s32.totalorder %s27, 0
      %p132 = por %p130, %p131
      %p133 = scmp.ne.s32.totalorder %s121, %s122
      %p134 = scmp.eq.s32.totalorder %s28, 1
      %p135 = por %p133, %p134
      %p137 = scmp.ne.s32.totalorder %s122, %s136
      %p138 = scmp.eq.s32.totalorder %s28, 0
      %p139 = por %p137, %p138
      %s141 = sadd.s32 %s140, 1
      %p144 = scmp.eq.s32.totalorder %s22, 1
      %p145 = scmp.ne.s32.totalorder %s140, %s142
      %p146 = scmp.eq.s32.totalorder %s22, 0
      %p147 = por %p145, %p146
      %p148 = scmp.ne.s32.totalorder %s140, %s142
      %p149 = scmp.eq.s32.totalorder %s27, 1
      %p150 = por %p148, %p149
      %p151 = scmp.ne.s32.totalorder %s142, %s143
      %p152 = scmp.eq.s32.totalorder %s27, 0
      %p153 = por %p151, %p152
      %p154 = scmp.ne.s32.totalorder %s142, %s143
      %p155 = scmp.eq.s32.totalorder %s28, 1
      %p156 = por %p154, %p155
      %p158 = scmp.ne.s32.totalorder %s143, %s157
      %p159 = scmp.eq.s32.totalorder %s28, 0
      %p160 = por %p158, %p159
      %s162 = sadd.s32 %s161, 1
      %p165 = scmp.eq.s32.totalorder %s22, 1
      %p166 = scmp.ne.s32.totalorder %s161, %s163
      %p167 = scmp.eq.s32.totalorder %s22, 0
      %p168 = por %p166, %p167
      %p169 = scmp.ne.s32.totalorder %s161, %s163
      %p170 = scmp.eq.s32.totalorder %s27, 1
      %p171 = por %p169, %p170
      %p172 = scmp.ne.s32.totalorder %s163, %s164
      %p173 = scmp.eq.s32.totalorder %s27, 0
      %p174 = por %p172, %p173
      %p175 = scmp.ne.s32.totalorder %s163, %s164
      %p176 = scmp.eq.s32.totalorder %s28, 1
      %p177 = por %p175, %p176
      %p179 = scmp.ne.s32.totalorder %s164, %s178
      %p180 = scmp.eq.s32.totalorder %s28, 0
      %p181 = por %p179, %p180
      %s182 = ssub.s32 %s22, %s29
      %p183 = scmp.eq.s32.totalorder %s182, 0
      %s185 = sadd.s32 %s184, 1
      %s186 = scalar_select %p183, %s184, %s185
      %p189 = pneg %p183
      %p190 = scmp.eq.s32.totalorder %s22, 1
      %p191 = por %p189, %p190
      %p192 = scmp.ne.s32.totalorder %s184, %s187
      %p193 = scmp.eq.s32.totalorder %s22, 0
      %p194 = por %p192, %p193
      %p195 = scmp.ne.s32.totalorder %s184, %s187
      %p196 = scmp.eq.s32.totalorder %s27, 1
      %p197 = por %p195, %p196
      %p198 = scmp.ne.s32.totalorder %s187, %s188
      %p199 = scmp.eq.s32.totalorder %s27, 0
      %p200 = por %p198, %p199
      %p201 = scmp.ne.s32.totalorder %s187, %s188
      %p202 = scmp.eq.s32.totalorder %s28, 1
      %p203 = por %p201, %p202
      %p205 = scmp.ne.s32.totalorder %s188, %s204
      %p206 = scmp.eq.s32.totalorder %s28, 0
      %p207 = por %p205, %p206
      %p208 = scmp.le.s32.totalorder 1, %s22
      %p209 = scmp.lt.s32.totalorder %s22, 3
      %p210 = pnand %p208, %p209
      %p211 = pneg %p210
      // Predicated region
      $region9: #{tpu_custom_call.1} parent=5 // pred_check
        _
      $region10: #{tpu_custom_call.1} parent=5 // pred_check_branch
        %213 = sbr.rel (%p210) target = $region12
      $region11: #{tpu_custom_call.1} parent=5 // pred_region
        %s214 = ssub.s32 %s22, 1
        // Predicated region
        $region13: #{tpu_custom_call.1} parent=11 // pred_check
          %p215 = pneg %p69
        $region14: #{tpu_custom_call.1} parent=11 // pred_check_branch
          %217 = sbr.rel (%p215) target = $region16
        $region15: #{tpu_custom_call.1} parent=11 // pred_region
          _
        $region16: #{tpu_custom_call.1} parent=11 // pred_fallthru
          _
        // Predicated region
        $region17: #{tpu_custom_call.1} parent=11 // pred_check
          %p218 = pneg %p90
        $region18: #{tpu_custom_call.1} parent=11 // pred_check_branch
          %220 = sbr.rel (%p218) target = $region20
        $region19: #{tpu_custom_call.1} parent=11 // pred_region
          %s222 = ssub.s32 256, 256
          %223 = vsyncadd [#allocation7], %s222
          %s224 = sshll.u32 [#allocation6], 4
          %s225 = int_to_ptr.vmem [resolvable:$true] %s224
          %230 = dma.hbm_to_vmem [thread:$0]  %s3, 256, %s225, [#allocation7], 64, 64, 4
        $region20: #{tpu_custom_call.1} parent=11 // pred_fallthru
          _
        // Predicated region
        $region21: #{tpu_custom_call.1} parent=11 // pred_check
          %p231 = pneg %p111
        $region22: #{tpu_custom_call.1} parent=11 // pred_check_branch
          %233 = sbr.rel (%p231) target = $region24
        $region23: #{tpu_custom_call.1} parent=11 // pred_region
          %s235 = ssub.s32 256, 256
          %236 = vsyncadd [#allocation7], %s235
          %s237 = sshll.u32 [#allocation8], 4
          %s238 = int_to_ptr.vmem [resolvable:$true] %s237
          %243 = dma.hbm_to_vmem [thread:$0]  %s4, 256, %s238, [#allocation7], 64, 64, 4
        $region24: #{tpu_custom_call.1} parent=11 // pred_fallthru
          _
        // Predicated region
        $region25: #{tpu_custom_call.1} parent=11 // pred_check
          %p244 = pneg %p132
        $region26: #{tpu_custom_call.1} parent=11 // pred_check_branch
          %246 = sbr.rel (%p244) target = $region28
        $region27: #{tpu_custom_call.1} parent=11 // pred_region
          _
        $region28: #{tpu_custom_call.1} parent=11 // pred_fallthru
          _
        // Predicated region
        $region29: #{tpu_custom_call.1} parent=11 // pred_check
          %p247 = pneg %p153
        $region30: #{tpu_custom_call.1} parent=11 // pred_check_branch
          %249 = sbr.rel (%p247) target = $region32
        $region31: #{tpu_custom_call.1} parent=11 // pred_region
          _
        $region32: #{tpu_custom_call.1} parent=11 // pred_fallthru
          _
        // Predicated region
        $region33: #{tpu_custom_call.1} parent=11 // pred_check
          %p250 = pneg %p174
        $region34: #{tpu_custom_call.1} parent=11 // pred_check_branch
          %252 = sbr.rel (%p250) target = $region36
        $region35: #{tpu_custom_call.1} parent=11 // pred_region
          _
        $region36: #{tpu_custom_call.1} parent=11 // pred_fallthru
          _
      $region12: #{tpu_custom_call.1} parent=5 // pred_fallthru
        _
      %p253 = scmp.lt.s32.totalorder %s22, 2
      // Predicated region
      $region37: #{tpu_custom_call.1} parent=5 // pred_check
        %p254 = pneg %p253
      $region38: #{tpu_custom_call.1} parent=5 // pred_check_branch
        %256 = sbr.rel (%p254) target = $region40
      $region39: #{tpu_custom_call.1} parent=5 // pred_region
        // Predicated region
        $region41: #{tpu_custom_call.1} parent=39 // pred_check
          %p257 = pneg %p42
        $region42: #{tpu_custom_call.1} parent=39 // pred_check_branch
          %259 = sbr.rel (%p257) target = $region44
        $region43: #{tpu_custom_call.1} parent=39 // pred_region
          %s260 = sand.u32 %s32, 1
          %s261 = scalar_lea.sflag [#allocation5], %s260
          %s262 = sand.u32 %s32, 1
          %s263 = smul.addr %s262, 8
          %s264 = scalar_lea.vmem [#allocation4], %s263
          %s266 = ssub.s32 128, 128
          %267 = vsyncadd %s261, %s266
          %s268 = smul.addr %s22, 2
          %s269 = smul.addr %s268, 64
          %s270 = scalar_lea.hbm %s1, %s269
          %s271 = sshll.u32 %s264, 4
          %s272 = int_to_ptr.vmem [resolvable:$true] %s271
          %277 = dma.hbm_to_vmem [thread:$0]  %s270, 128, %s272, %s261, 64, 64, 4
        $region44: #{tpu_custom_call.1} parent=39 // pred_fallthru
          _
      $region40: #{tpu_custom_call.1} parent=5 // pred_fallthru
        _
      %p278 = scmp.le.s32.totalorder 1, %s22
      %p279 = scmp.lt.s32.totalorder %s22, 3
      %p280 = pnand %p278, %p279
      %p281 = pneg %p280
      // Predicated region
      $region45: #{tpu_custom_call.1} parent=5 // pred_check
        _
      $region46: #{tpu_custom_call.1} parent=5 // pred_check_branch
        %283 = sbr.rel (%p280) target = $region48
      $region47: #{tpu_custom_call.1} parent=5 // pred_region
        %s284 = ssub.s32 %s22, 1
        %s285 = sand.u32 %s35, 1
        %s286 = scalar_lea.sflag [#allocation5], %s285
        %s287 = sand.u32 %s35, 1
        %s288 = smul.addr %s287, 8
        %s289 = scalar_lea.vmem [#allocation4], %s288
        // Predicated region
        $region49: #{tpu_custom_call.1} parent=47 // pred_check
          %p290 = pneg %p48
        $region50: #{tpu_custom_call.1} parent=47 // pred_check_branch
          %292 = sbr.rel (%p290) target = $region52
        $region51: #{tpu_custom_call.1} parent=47 // pred_region
          %293 = dma.done %s286, 128
        $region52: #{tpu_custom_call.1} parent=47 // pred_fallthru
          _
        // Predicated region
        $region53: #{tpu_custom_call.1} parent=47 // pred_check
          %p294 = pneg %p90
        $region54: #{tpu_custom_call.1} parent=47 // pred_check_branch
          %296 = sbr.rel (%p294) target = $region56
        $region55: #{tpu_custom_call.1} parent=47 // pred_region
          %297 = dma.done [#allocation7], 256
        $region56: #{tpu_custom_call.1} parent=47 // pred_fallthru
          _
        // Predicated region
        $region57: #{tpu_custom_call.1} parent=47 // pred_check
          %p298 = pneg %p111
        $region58: #{tpu_custom_call.1} parent=47 // pred_check_branch
          %300 = sbr.rel (%p298) target = $region60
        $region59: #{tpu_custom_call.1} parent=47 // pred_region
          %301 = dma.done [#allocation7], 256
        $region60: #{tpu_custom_call.1} parent=47 // pred_fallthru
          _
        %s302 = sand.u32 %s35, 1
        %s303 = scalar_lea.sflag [#allocation5], %s302
        %s304 = sand.u32 %s35, 1
        %s305 = smul.addr %s304, 8
        %s306 = scalar_lea.vmem [#allocation4], %s305
        %p307 = pneg %p48
        %p308 = pneg %p45
        %p309 = pneg %p69
        %p310 = pneg %p66
        %p311 = pneg %p90
        %p312 = pneg %p87
        %p313 = pneg %p111
        %p314 = pneg %p108
        %p315 = pneg %p132
        %p316 = pneg %p129
        %p317 = pneg %p153
        %p318 = pneg %p150
        %p319 = pneg %p174
        %p320 = pneg %p171
        %p321 = pneg %p200
        %p322 = pneg %p197
        %p323 = scmp.lt.s32.totalorder %s27, 1
        %s324 = scalar_select %p323, %s27, 1
        %s325 = smul.addr %s324, 2
        %s326 = smul.addr %s325, 8
        %s327 = scalar_lea.vmem %s8, %s326
        %p328 = scmp.lt.s32.totalorder %s27, 1
        %s329 = scalar_select %p328, %s27, 1
        %s330 = smul.addr %s329, 2
        %s331 = smul.addr %s330, 8
        %s332 = scalar_lea.vmem %s8, %s331
        %s338 = sld [smem:[#allocation3 + %s27]]
        %v339 = vstv %s338
        %v340 = vld [vmem:[%s2] sm:$0x1]
        %v341 = vld [vmem:[%s5] sm:$0x1]
        %v342 = vld [vmem:[%s7] sm:$0x1]
        %v343 = vld [vmem:[%s289] sm:$0xf]
        %v344 = vld [vmem:[%s289 + $0x4] sm:$0xf]
        %vm345 = vcmp.ne.bf16.partialorder %v343, %v343
        %vm346 = vcmp.ne.bf16.partialorder %v344, %v344
        %v347 = vsel %vm345, 0, %v343
        %v348 = vsel %vm346, 0, %v344
        %vm349 = vcmp.eq.bf16.partialorder %v347, 2139127680
        %vm350 = vcmp.eq.bf16.partialorder %v348, 2139127680
        %v351 = vsel %vm349, 1065369472, %v347
        %v352 = vsel %vm350, 1065369472, %v348
        %vm353 = vcmp.eq.bf16.partialorder %v351, 4286644096
        %vm354 = vcmp.eq.bf16.partialorder %v352, 4286644096
        %v355 = vsel %vm353, 3212885888, %v351
        %v356 = vsel %vm354, 3212885888, %v352
        %v357 = vunpack.c.l.bf16 %v355
        %v358 = vunpack.c.l.bf16 %v356
        %v359 = vlaneseq
        %v360 = vshrl.u32 %v359, 7
        %v361 = vadd.s32 %v360, 8
        %v362 = vstv 0
        %v363 = vadd.s32 %v360, %v362
        %v364 = vadd.s32 %v361, %v362
        %vm365 = vcmp.lt.s32.totalorder %v363, %v339
        %vm366 = vcmp.lt.s32.totalorder %v364, %v339
        %v368 = vlaneseq
        %v369 = vshrl.u32 %v368, 7
        %v370 = vsub.s32 0, %v369
        %v371 = vrot.slane %v340, %v370
        %v373 = vmul.f32 %v357, %v371
        %v374 = vmul.f32 %v358, %v371
        %vm375 = vcmask 261120
        %v376 = vsel %vm375, %v373, 0.0
        %377 = vadd.xlane.f32.xlu0 %v376
        %v378 = vpop.xlane.xlu0 %377
        %v379 = vsel %vm375, %v374, 0.0
        %380 = vadd.xlane.f32.xlu0 %v379
        %v381 = vpop.xlane.xlu0 %380
        %v382 = vsel %vm365, %v378, -1e+09
        %v383 = vsel %vm366, %v381, -1e+09
        %v384 = vmax.f32 %v382, %v383
        %v385 = vrot.slane %v384, 4
        %v386 = vmax.f32 %v384, %v385
        %v387 = vrot.slane %v386, 2
        %v388 = vmax.f32 %v386, %v387
        %v389 = vrot.slane %v388, 1
        %v390 = vmax.f32 %v388, %v389
        %v391 = vmax.f32 %v390, -1e+09
        %v392 = vsub.f32 -1e+09, %v391
        %v393 = vmul.f32 %v392, 1.442695
        %v394 = vpow.pop %v393
        %v395 = vsub.f32 %v382, %v391
        %v396 = vsub.f32 %v383, %v391
        %v397 = vmul.f32 %v395, 1.442695
        %v398 = vpow.pop %v397
        %v399 = vmul.f32 %v396, 1.442695
        %v400 = vpow.pop %v399
        %v401 = vmul.f32 %v394, 0.0
        %v402 = vadd.f32 %v398, %v400
        %v403 = vrot.slane %v402, 4
        %v404 = vadd.f32 %v402, %v403
        %v405 = vrot.slane %v404, 2
        %v406 = vadd.f32 %v404, %v405
        %v407 = vrot.slane %v406, 1
        %v408 = vadd.f32 %v406, %v407
        %v409 = vadd.f32 %v401, %v408
        %v410 = vmul.f32 %v398, %v357
        %v411 = vmul.f32 %v400, %v358
        %v412 = vsel %vm375, %v410, 0.0
        %v413 = vsel %vm375, %v411, 0.0
        %v414 = vadd.f32 %v412, %v413
        %v415 = vrot.slane %v414, 4
        %v416 = vadd.f32 %v414, %v415
        %v417 = vrot.slane %v416, 2
        %v418 = vadd.f32 %v416, %v417
        %v419 = vrot.slane %v418, 1
        %v420 = vadd.f32 %v418, %v419
        %v421 = vadd.f32 %v401, %v420
        %v422 = vrcp.pop %v409
        %v423 = vmul.f32 %v421, %v422
        %v424 = vpack.c.bf16 %v423, %v423
        %v425 = vld [vmem:[#allocation6] sm:$0xf]
        %v426 = vld [vmem:[#allocation6 + $0x4] sm:$0xf]
        %v427 = vld [vmem:[#allocation6 + $0x8] sm:$0xf]
        %v428 = vld [vmem:[#allocation6 + $0xc] sm:$0xf]
        %v433 = vunpack.c.l.b16 %v425
        %v434 = vunpack.c.l.b16 %v426
        %v435 = vunpack.c.l.b16 %v427
        %v436 = vunpack.c.l.b16 %v428
        %v437 = vpack.c.b16 %v434, %v433
        %v438 = vpack.c.b16 %v436, %v435
        %v442 = vsel %vm375, %v424, 0
        %444 = vmatprep.subr.bf16.mxu0 0
        %445 = vmatpush1.bf16.msra.mxu0 %v437
        %446 = vmatprep.subr.bf16.mxu0 0
        %447 = vmatpush1.bf16.msra.mxu0 %v438
        %448 = vmatprep.subr.bf16.mxu0 0
        %449 = vmatpush1.bf16.msra.mxu0 0
        %450 = vmatprep.subr.bf16.mxu0 0
        %451 = vmatpush1.bf16.msra.mxu0 0
        %452 = vmatprep.subr.bf16.mxu0 0
        %453 = vmatpush1.bf16.msra.mxu0 0
        %454 = vmatprep.subr.bf16.mxu0 0
        %455 = vmatpush1.bf16.msra.mxu0 0
        %456 = vmatprep.subr.bf16.mxu0 0
        %457 = vmatpush1.bf16.msra.mxu0 0
        %458 = vmatprep.subr.bf16.mxu0 0
        %459 = vmatpush1.bf16.msra.mxu0 0
        %460 = vmatprep.subr.bf16.mxu0 0
        %461 = vmatpush1.bf16.msra.mxu0 0
        %462 = vmatprep.subr.bf16.mxu0 0
        %463 = vmatpush1.bf16.msra.mxu0 0
        %464 = vmatprep.subr.bf16.mxu0 0
        %465 = vmatpush1.bf16.msra.mxu0 0
        %466 = vmatprep.subr.bf16.mxu0 0
        %467 = vmatpush1.bf16.msra.mxu0 0
        %468 = vmatprep.subr.bf16.mxu0 0
        %469 = vmatpush1.bf16.msra.mxu0 0
        %470 = vmatprep.subr.bf16.mxu0 0
        %471 = vmatpush1.bf16.msra.mxu0 0
        %472 = vmatprep.subr.bf16.mxu0 0
        %473 = vmatpush1.bf16.msra.mxu0 0
        %474 = vmatprep.subr.bf16.mxu0 0
        %475 = vmatpush1.bf16.msra.mxu0 0
        %476 = vmatprep.mubr.bf16.mxu0 0
        %477 = vmatmul.mubr.bf16.gmra.mrb[0].mxu0 %v442
        %v478 = vpop.f32.mrb[0].mxu0
        %v479 = vadd.f32 0.0, %v478
        %v480 = vpop.f32.mrb[0].mxu0
        %v481 = vpop.f32.mrb[0].mxu0
        %v482 = vpop.f32.mrb[0].mxu0
        %483 = vdwg.mxu0
        %v484 = vld [vmem:[#allocation8] sm:$0xf]
        %v485 = vld [vmem:[#allocation8 + $0x4] sm:$0xf]
        %v486 = vld [vmem:[#allocation8 + $0x8] sm:$0xf]
        %v487 = vld [vmem:[#allocation8 + $0xc] sm:$0xf]
        %v490 = vunpack.c.l.b16 %v355
        %v491 = vunpack.c.l.b16 %v356
        %v492 = vpack.c.b16 %v491, %v490
        %v497 = vunpack.c.l.b16 %v484
        %v498 = vunpack.c.l.b16 %v485
        %v499 = vunpack.c.l.b16 %v486
        %v500 = vunpack.c.l.b16 %v487
        %v501 = vpack.c.b16 %v498, %v497
        %v502 = vpack.c.b16 %v500, %v499
        %v506 = vsel %vm375, %v492, 0
        %508 = vmatprep.subr.bf16.mxu0 0
        %509 = vmatpush1.bf16.msra.mxu0 %v501
        %510 = vmatprep.subr.bf16.mxu0 0
        %511 = vmatpush1.bf16.msra.mxu0 %v502
        %512 = vmatprep.subr.bf16.mxu0 0
        %513 = vmatpush1.bf16.msra.mxu0 0
        %514 = vmatprep.subr.bf16.mxu0 0
        %515 = vmatpush1.bf16.msra.mxu0 0
        %516 = vmatprep.subr.bf16.mxu0 0
        %517 = vmatpush1.bf16.msra.mxu0 0
        %518 = vmatprep.subr.bf16.mxu0 0
        %519 = vmatpush1.bf16.msra.mxu0 0
        %520 = vmatprep.subr.bf16.mxu0 0
        %521 = vmatpush1.bf16.msra.mxu0 0
        %522 = vmatprep.subr.bf16.mxu0 0
        %523 = vmatpush1.bf16.msra.mxu0 0
        %524 = vmatprep.subr.bf16.mxu0 0
        %525 = vmatpush1.bf16.msra.mxu0 0
        %526 = vmatprep.subr.bf16.mxu0 0
        %527 = vmatpush1.bf16.msra.mxu0 0
        %528 = vmatprep.subr.bf16.mxu0 0
        %529 = vmatpush1.bf16.msra.mxu0 0
        %530 = vmatprep.subr.bf16.mxu0 0
        %531 = vmatpush1.bf16.msra.mxu0 0
        %532 = vmatprep.subr.bf16.mxu0 0
        %533 = vmatpush1.bf16.msra.mxu0 0
        %534 = vmatprep.subr.bf16.mxu0 0
        %535 = vmatpush1.bf16.msra.mxu0 0
        %536 = vmatprep.subr.bf16.mxu0 0
        %537 = vmatpush1.bf16.msra.mxu0 0
        %538 = vmatprep.subr.bf16.mxu0 0
        %539 = vmatpush1.bf16.msra.mxu0 0
        %540 = vmatprep.mubr.bf16.mxu0 0
        %541 = vmatmul.mubr.bf16.gmra.mrb[0].mxu0 %v506
        %v542 = vpop.f32.mrb[0].mxu0
        %v543 = vadd.f32 0.0, %v542
        %v544 = vpop.f32.mrb[0].mxu0
        %v545 = vpop.f32.mrb[0].mxu0
        %v546 = vadd.f32 0.0, %v545
        %v547 = vpop.f32.mrb[0].mxu0
        %548 = vdwg.mxu0
        %v549 = vlaneseq
        %v550 = vshrl.u32 %v549, 7
        %v551 = vsub.s32 0, %v550
        %v552 = vrot.slane %v479, %v551
        %v553 = vadd.f32 %v552, %v543
        %v554 = vadd.f32 %v552, %v546
        %v556 = vlaneseq
        %v557 = vshrl.u32 %v556, 7
        %v558 = vsub.s32 0, %v557
        %v559 = vrot.slane %v341, %v558
        %v561 = vadd.f32 %v553, %v559
        %v562 = vadd.f32 %v554, %v559
        %v563 = vxor.u32 %v561, 2147483648
        %v564 = vxor.u32 %v562, 2147483648
        %v565 = vmul.f32 %v563, 1.442695
        %v566 = vpow.pop %v565
        %v567 = vmul.f32 %v564, 1.442695
        %v568 = vpow.pop %v567
        %v569 = vadd.f32 %v566, 1.0
        %v570 = vadd.f32 %v568, 1.0
        %v571 = vrcp.pop %v569
        %v572 = vmul.f32 1.0, %v571
        %v573 = vrcp.pop %v570
        %v574 = vmul.f32 1.0, %v573
        %v575 = vmul.f32 %v572, %v423
        %v576 = vmul.f32 %v574, %v423
        %v577 = vsub.f32 1.0, %v572
        %v578 = vsub.f32 1.0, %v574
        %v579 = vmul.f32 %v577, %v357
        %v580 = vmul.f32 %v578, %v358
        %v581 = vadd.f32 %v575, %v579
        %v582 = vadd.f32 %v576, %v580
        %v583 = vsel %vm365, 1, 0
        %v584 = vsel %vm366, 1, 0
        %vm585 = vcmp.eq.s32.totalorder %v583, 1
        %vm586 = vcmp.eq.s32.totalorder %v584, 1
        %v587 = vsel %vm585, %v581, 0.0
        %v588 = vsel %vm586, %v582, 0.0
        %v589 = vadd.f32 %v357, %v587
        %v590 = vadd.f32 %v358, %v588
        %v591 = vpack.c.bf16 %v590, %v589
        %v592 = vld [vmem:[%s6] sm:$0xf]
        %v593 = vld [vmem:[%s6 + $0x4] sm:$0xf]
        %v594 = vld [vmem:[%s6 + $0x8] sm:$0xf]
        %v595 = vld [vmem:[%s6 + $0xc] sm:$0xf]
        %v600 = vunpack.c.l.b16 %v592
        %v601 = vunpack.c.l.b16 %v593
        %v602 = vunpack.c.l.b16 %v594
        %v603 = vunpack.c.l.b16 %v595
        %v604 = vpack.c.b16 %v601, %v600
        %v605 = vpack.c.b16 %v603, %v602
        %v609 = vsel %vm375, %v591, 0
        %611 = vmatprep.subr.bf16.mxu0 0
        %612 = vmatpush1.bf16.msra.mxu0 %v604
        %613 = vmatprep.subr.bf16.mxu0 0
        %614 = vmatpush1.bf16.msra.mxu0 %v605
        %615 = vmatprep.subr.bf16.mxu0 0
        %616 = vmatpush1.bf16.msra.mxu0 0
        %617 = vmatprep.subr.bf16.mxu0 0
        %618 = vmatpush1.bf16.msra.mxu0 0
        %619 = vmatprep.subr.bf16.mxu0 0
        %620 = vmatpush1.bf16.msra.mxu0 0
        %621 = vmatprep.subr.bf16.mxu0 0
        %622 = vmatpush1.bf16.msra.mxu0 0
        %623 = vmatprep.subr.bf16.mxu0 0
        %624 = vmatpush1.bf16.msra.mxu0 0
        %625 = vmatprep.subr.bf16.mxu0 0
        %626 = vmatpush1.bf16.msra.mxu0 0
        %627 = vmatprep.subr.bf16.mxu0 0
        %628 = vmatpush1.bf16.msra.mxu0 0
        %629 = vmatprep.subr.bf16.mxu0 0
        %630 = vmatpush1.bf16.msra.mxu0 0
        %631 = vmatprep.subr.bf16.mxu0 0
        %632 = vmatpush1.bf16.msra.mxu0 0
        %633 = vmatprep.subr.bf16.mxu0 0
        %634 = vmatpush1.bf16.msra.mxu0 0
        %635 = vmatprep.subr.bf16.mxu0 0
        %636 = vmatpush1.bf16.msra.mxu0 0
        %637 = vmatprep.subr.bf16.mxu0 0
        %638 = vmatpush1.bf16.msra.mxu0 0
        %639 = vmatprep.subr.bf16.mxu0 0
        %640 = vmatpush1.bf16.msra.mxu0 0
        %641 = vmatprep.subr.bf16.mxu0 0
        %642 = vmatpush1.bf16.msra.mxu0 0
        %643 = vmatprep.mubr.bf16.mxu0 0
        %644 = vmatmul.mubr.bf16.gmra.mrb[0].mxu0 %v609
        %v645 = vpop.f32.mrb[0].mxu0
        %v646 = vadd.f32 0.0, %v645
        %v647 = vpop.f32.mrb[0].mxu0
        %v648 = vpop.f32.mrb[0].mxu0
        %v649 = vadd.f32 0.0, %v648
        %v650 = vpop.f32.mrb[0].mxu0
        %651 = vdwg.mxu0
        %v653 = vlaneseq
        %v654 = vshrl.u32 %v653, 7
        %v655 = vsub.s32 0, %v654
        %v656 = vrot.slane %v342, %v655
        %v658 = vadd.f32 %v646, %v656
        %v659 = vadd.f32 %v649, %v656
        %v660 = vxor.u32 %v658, 2147483648
        %v661 = vxor.u32 %v659, 2147483648
        %v662 = vmul.f32 %v660, 1.442695
        %v663 = vpow.pop %v662
        %v664 = vmul.f32 %v661, 1.442695
        %v665 = vpow.pop %v664
        %v666 = vadd.f32 %v663, 1.0
        %v667 = vadd.f32 %v665, 1.0
        %v668 = vrcp.pop %v666
        %v669 = vmul.f32 1.0, %v668
        %v670 = vrcp.pop %v667
        %v671 = vmul.f32 1.0, %v670
        %v672 = vmax.f32 %v669, 1e-07
        %v673 = vmax.f32 %v671, 1e-07
        %v674 = vmin.f32 %v672, 0.9999999
        %v675 = vmin.f32 %v673, 0.9999999
        %vm676 = vcmask 64512
        %677 = vst.msk [vmem:[%s332] sm:$0xff] %vm676, %v674
        %678 = vst.msk [vmem:[%s332 + $0x8] sm:$0xff] %vm676, %v675
        %p679 = scmp.lt.s32.totalorder %s27, 1
        %s680 = scalar_select %p679, %s27, 1
        %s681 = smul.addr %s680, 2
        %s682 = smul.addr %s681, 8
        %s683 = scalar_lea.vmem %s8, %s682
        // Predicated region
        $region61: #{tpu_custom_call.1} parent=47 // pred_check
          %p684 = pneg %p197
        $region62: #{tpu_custom_call.1} parent=47 // pred_check_branch
          %686 = sbr.rel (%p684) target = $region64
        $region63: #{tpu_custom_call.1} parent=47 // pred_region
          _
        $region64: #{tpu_custom_call.1} parent=47 // pred_fallthru
          _
      $region48: #{tpu_custom_call.1} parent=5 // pred_fallthru
        _
      %p687 = scmp.le.s32.totalorder 2, %s22
      // Predicated region
      $region65: #{tpu_custom_call.1} parent=5 // pred_check
        %p688 = pneg %p687
      $region66: #{tpu_custom_call.1} parent=5 // pred_check_branch
        %690 = sbr.rel (%p688) target = $region68
      $region67: #{tpu_custom_call.1} parent=5 // pred_region
        %s691 = ssub.s32 %s22, 2
        // Predicated region
        $region69: #{tpu_custom_call.1} parent=67 // pred_check
          %p692 = pneg %p203
        $region70: #{tpu_custom_call.1} parent=67 // pred_check_branch
          %694 = sbr.rel (%p692) target = $region72
        $region71: #{tpu_custom_call.1} parent=67 // pred_region
          %p695 = scmp.lt.s32.totalorder %s28, 1
          %s696 = scalar_select %p695, %s28, 1
          %s697 = smul.addr %s696, 2
          %s698 = smul.addr %s697, 8
          %s699 = scalar_lea.vmem %s8, %s698
        $region72: #{tpu_custom_call.1} parent=67 // pred_fallthru
          _
      $region68: #{tpu_custom_call.1} parent=5 // pred_fallthru
        _
    $region6: #{tpu_custom_call.1} parent=1 // loop_footer
      %s26 = sadd.s32 1, %s22
    $region7: #{tpu_custom_call.1} parent=1 // loop_footer_branch
      %21 = sbr.rel target = $region3
    $region8: #{tpu_custom_call.1} parent=1 // loop_exit
      _
    %700 = vsyncpa [#allocation5], 1
    %s701 = scalar_lea.sflag [#allocation5], 1
    %702 = vsyncpa %s701, 1
    %703 = vsyncpa [#allocation7], 1

</llo_original>
